<compile_context>
chip_gen: v7x
topology: tpu7x:2x2x1
jax: 0.10.0
libtpu: 0.0.40
codegen_flags: <defaults>
</compile_context>

<pallas_src>
import jax
import jax.numpy as jnp
from jax.experimental import pallas as pl
from jax.experimental.pallas import tpu as pltpu


def _round_up(x, m):
    return ((x + m - 1) // m) * m


def _make_mlp_kernel(n_chunks, ch):
    """Kernel over one batch tile of TB = n_chunks * ch lanes."""

    def mlp_kernel(x_ref, w1_ref, w23_ref, w4_ref, b_ref, o_ref):
        # x_ref:   [TB, F]     input tile (batch rows, feature lanes), f32
        # w1_ref:  [32, F]     layer-1 weight (PyTorch [out, in] orientation)
        # w23_ref: [2, 32, 32] layers 2 and 3 weights
        # w4_ref:  [32, 1]     layer-4 weight as a column (VPU mul + XLU reduce)
        # b_ref:   [32, 4]     biases packed column-wise (b4 lives at [0, 3])
        # o_ref:   [1, TB]     lane-dense output row
        w1 = w1_ref[...]
        w2 = w23_ref[0]
        w3 = w23_ref[1]
        w4 = w4_ref[...]
        b = b_ref[...]
        b1, b2, b3 = b[:, 0:1], b[:, 1:2], b[:, 2:3]
        b4 = b[0:1, 3:4]

        # Fully-unrolled sub-chunk loop with static slices: bounds live ranges
        # of the [32, ch] activations (no vreg spilling at large TB) while the
        # per-step DMA stays large.
        for c in range(n_chunks):
            r = c * ch
            x = x_ref[r:r + ch, :]                       # [ch, F]

            # Layer 1: trans_b matmul on the MXU -> [32, ch]; no host transpose.
            h = jax.lax.dot_general(
                w1, x, (((1,), (1,)), ((), ())),
                preferred_element_type=jnp.float32) + b1
            h = jnp.maximum(h, 0.0)                      # ReLU (+ identity dropout)

            # Layer 2
            h = jnp.dot(w2, h, preferred_element_type=jnp.float32) + b2
            h = jnp.maximum(h, 0.0)                      # ReLU (+ identity dropout)

            # Layer 3
            h = jnp.dot(w3, h, preferred_element_type=jnp.float32) + b3
            h = jnp.maximum(h, 0.0)                      # ReLU

            # Layer 4 (32 -> 1): VPU elementwise mul + XLU sublane reduce
            # instead of an almost-empty N=1 MXU matmul.
            out = jnp.sum(h * w4, axis=0, keepdims=True) + b4   # [1, ch]
            o_ref[:, r:r + ch] = out.astype(o_ref.dtype)

    return mlp_kernel


def _choose_tb(batch, features, tb=None):
    """Pick the batch tile (lane extent) per grid step."""
    if tb is not None:
        TB = max(128, _round_up(int(tb), 128))
    else:
        # Target ~1 MiB of input per grid step to amortize per-step overhead.
        TB = -(-(1 << 20) // (4 * max(features, 1)))
        TB = max(2048, _round_up(TB, 256))
        # v7x: keep >= 4 grid steps so both TensorCores get >= 2 steps each.
        TB = min(TB, max(256, _round_up(pl.cdiv(batch, 4), 256)))
        # VMEM budget: 2x input block (double buffer) + intermediates headroom
        # + output, kept well inside v7x's 64 MiB physical VMEM.
        per_lane_bytes = 2 * features * 4 + 8 * 32 * 4 + 2 * 4
        TB = min(TB, max(256, ((40 << 20) // per_lane_bytes // 256) * 256))
    if batch <= TB:
        return batch        # single tile; block == full array
    return TB


def neural_network_forward(x, params, tb=None):
    """x: [B, input_size] float32 (PyTorch layout). Returns [B, 1] float32.

    params: weights in PyTorch [out_features, in_features] orientation,
    biases as [out_features] vectors (see init_params).
    tb: optional batch tile override (lane extent per grid step).
    """
    B, F = x.shape

    # ---- operand consolidation (done once, outside the kernel) ----
    w1 = params["w1"]                                        # [32, F]
    w23 = jnp.stack([params["w2"], params["w3"]], axis=0)    # [2, 32, 32]
    w4c = params["w4"].T                                     # [32, 1]
    b4_col = jnp.zeros((32,), jnp.float32).at[0].set(params["b4"][0])
    b_packed = jnp.stack(
        [params["b1"], params["b2"], params["b3"], b4_col], axis=1)  # [32, 4]

    TB = _choose_tb(B, F, tb)
    grid = (pl.cdiv(B, TB),)      # ragged last tile handled by Pallas masking

    # Sub-chunking of the tile inside the kernel (bounds vreg live ranges).
    if TB % 512 == 0:
        ch = 512
    elif TB % 256 == 0:
        ch = 256
    else:
        ch = TB
    n_chunks = TB // ch

    # VMEM budget / limit (scoped defaults are only 16/32 MiB).
    weight_vmem = 4 * int(w1.size + w23.size + w4c.size + b_packed.size)
    step_vmem = (2 * (TB * F * 4) + 2 * (TB * 4)
                 + 6 * (32 * ch * 4) + 2 * weight_vmem)
    vmem_limit = int(min(48 << 20, max(32 << 20, step_vmem + (2 << 20))))

    # Advisory cost model: clearly memory-bound.
    weight_bytes = 4 * (32 * F + 2 * 32 * 32 + 32 + 32 * 4)
    cost = pl.CostEstimate(
        flops=2 * B * (F * 32 + 32 * 32 + 32 * 32 + 32),
        transcendentals=0,
        bytes_accessed=B * F * 4 + B * 4 + weight_bytes,
    )

    out_row = pl.pallas_call(
        _make_mlp_kernel(n_chunks, ch),
        out_shape=jax.ShapeDtypeStruct((1, B), jnp.float32),
        grid_spec=pltpu.PrefetchScalarGridSpec(
            num_scalar_prefetch=0,
            grid=grid,
            in_specs=[
                # batch-tiled input (pipelined / double-buffered per grid step)
                pl.BlockSpec((TB, F), lambda i: (i, 0)),
                # weights & biases: constant index -> VMEM-resident
                pl.BlockSpec(w1.shape, lambda i: (0, 0)),
                pl.BlockSpec(w23.shape, lambda i: (0, 0, 0)),
                pl.BlockSpec(w4c.shape, lambda i: (0, 0)),
                pl.BlockSpec(b_packed.shape, lambda i: (0, 0)),
            ],
            # lane-dense output row per batch tile
            out_specs=pl.BlockSpec((1, TB), lambda i: (0, i)),
        ),
        compiler_params=pltpu.CompilerParams(
            # batch tiles are independent -> megacore sharding on v7x
            dimension_semantics=("parallel",),
            vmem_limit_bytes=vmem_limit,
        ),
        cost_estimate=cost,
    )(x, w1, w23, w4c, b_packed)

    # (1, B) row-major == (B, 1) row-major: free relayout back to PyTorch shape.
    return out_row.reshape(B, 1)


def init_params(key, input_size, hidden=32):
    """Deterministic init mimicking nn.Linear (uniform +/- 1/sqrt(fan_in)).

    Weights are stored in PyTorch orientation [out_features, in_features];
    biases as [out_features] vectors.
    """
    dims = [(input_size, hidden), (hidden, hidden), (hidden, hidden), (hidden, 1)]
    params = {}
    for i, (fan_in, fan_out) in enumerate(dims, start=1):
        key, kw, kb = jax.random.split(key, 3)
        bound = 1.0 / jnp.sqrt(jnp.float32(fan_in))
        params[f"w{i}"] = jax.random.uniform(
            kw, (fan_out, fan_in), jnp.float32, -bound, bound)
        params[f"b{i}"] = jax.random.uniform(
            kb, (fan_out,), jnp.float32, -bound, bound)
    return params


def reference_forward(x, params):
    h = jnp.maximum(x @ params["w1"].T + params["b1"], 0.0)
    h = jnp.maximum(h @ params["w2"].T + params["b2"], 0.0)
    h = jnp.maximum(h @ params["w3"].T + params["b3"], 0.0)
    return h @ params["w4"].T + params["b4"]


if __name__ == "__main__":
    key = jax.random.PRNGKey(0)
    batch, input_size = 8, 16

    key, kx = jax.random.split(key)
    x = jax.random.normal(kx, (batch, input_size), jnp.float32)
    params = init_params(key, input_size)

    # 1) Single-tile path (block == full array).
    out = jax.block_until_ready(neural_network_forward(x, params))
    ref = reference_forward(x, params)
    assert out.shape == (batch, 1), out.shape
    assert jnp.allclose(out, ref, atol=1e-5, rtol=1e-5), "mismatch vs reference"

    # 2) Multi-tile path with a ragged last tile (Pallas boundary masking).
    key, kx2 = jax.random.split(key)
    x2 = jax.random.normal(kx2, (200, input_size), jnp.float32)
    out2 = jax.block_until_ready(neural_network_forward(x2, params, tb=128))
    ref2 = reference_forward(x2, params)
    assert out2.shape == (200, 1), out2.shape
    assert jnp.allclose(out2, ref2, atol=1e-5, rtol=1e-5), "mismatch (tiled)"

    # 3) Larger tile: exercises in-kernel sub-chunking + ragged last tile.
    key, kx3 = jax.random.split(key)
    x3 = jax.random.normal(kx3, (1536, input_size), jnp.float32)
    out3 = jax.block_until_ready(neural_network_forward(x3, params, tb=1024))
    ref3 = reference_forward(x3, params)
    assert out3.shape == (1536, 1), out3.shape
    assert jnp.allclose(out3, ref3, atol=1e-5, rtol=1e-5), "mismatch (chunked)"

    print("KERNEL_OK")
</pallas_src>

<mosaic_0001>
module attributes {stable_mosaic.version = 11 : i64} {
  func.func @mlp_kernel(%arg0: i32, %arg1: memref<8x16xf32, #tpu.memory_space<vmem>>, %arg2: memref<32x16xf32, #tpu.memory_space<vmem>>, %arg3: memref<2x32x32xf32, #tpu.memory_space<vmem>>, %arg4: memref<32x1xf32, #tpu.memory_space<vmem>>, %arg5: memref<32x4xf32, #tpu.memory_space<vmem>>, %arg6: memref<1x8xf32, #tpu.memory_space<vmem>>) attributes {dimension_semantics = [#tpu.dimension_semantics<parallel>], iteration_bounds = array<i64: 1>, scalar_prefetch = 0 : i64, scratch_operands = 0 : i64, tpu.core_type = #tpu.core_type<tc>, window_params = [{transform_indices = @transform_0, window_bounds = array<i64: 8, 16>}, {pipeline_mode = #tpu.pipeline_mode<synchronous>, transform_indices = @transform_1, window_bounds = array<i64: 32, 16>}, {pipeline_mode = #tpu.pipeline_mode<synchronous>, transform_indices = @transform_2, window_bounds = array<i64: 2, 32, 32>}, {pipeline_mode = #tpu.pipeline_mode<synchronous>, transform_indices = @transform_3, window_bounds = array<i64: 32, 1>}, {pipeline_mode = #tpu.pipeline_mode<synchronous>, transform_indices = @transform_4, window_bounds = array<i64: 32, 4>}, {transform_indices = @transform_5, window_bounds = array<i64: 1, 8>}]} {
    %c0 = arith.constant 0 : index
    %c0_0 = arith.constant 0 : index
    %0 = vector.load %arg2[%c0, %c0_0] : memref<32x16xf32, #tpu.memory_space<vmem>>, vector<32x16xf32>
    %c0_1 = arith.constant 0 : index
    %c0_2 = arith.constant 0 : index
    %c0_3 = arith.constant 0 : index
    %1 = vector.load %arg3[%c0_1, %c0_2, %c0_3] : memref<2x32x32xf32, #tpu.memory_space<vmem>>, vector<1x32x32xf32>
    %2 = vector.shape_cast %1 : vector<1x32x32xf32> to vector<32x32xf32>
    %c1 = arith.constant 1 : index
    %c0_4 = arith.constant 0 : index
    %c0_5 = arith.constant 0 : index
    %3 = vector.load %arg3[%c1, %c0_4, %c0_5] : memref<2x32x32xf32, #tpu.memory_space<vmem>>, vector<1x32x32xf32>
    %4 = vector.shape_cast %3 : vector<1x32x32xf32> to vector<32x32xf32>
    %c0_6 = arith.constant 0 : index
    %c0_7 = arith.constant 0 : index
    %5 = vector.load %arg4[%c0_6, %c0_7] : memref<32x1xf32, #tpu.memory_space<vmem>>, vector<32x1xf32>
    %c0_8 = arith.constant 0 : index
    %c0_9 = arith.constant 0 : index
    %6 = vector.load %arg5[%c0_8, %c0_9] : memref<32x4xf32, #tpu.memory_space<vmem>>, vector<32x4xf32>
    %7 = vector.extract_strided_slice %6 {offsets = [0, 0], sizes = [32, 1], strides = [1, 1]} : vector<32x4xf32> to vector<32x1xf32>
    %8 = vector.extract_strided_slice %6 {offsets = [0, 1], sizes = [32, 1], strides = [1, 1]} : vector<32x4xf32> to vector<32x1xf32>
    %9 = vector.extract_strided_slice %6 {offsets = [0, 2], sizes = [32, 1], strides = [1, 1]} : vector<32x4xf32> to vector<32x1xf32>
    %10 = vector.extract_strided_slice %6 {offsets = [0, 3], sizes = [1, 1], strides = [1, 1]} : vector<32x4xf32> to vector<1x1xf32>
    %c0_10 = arith.constant 0 : index
    %c0_11 = arith.constant 0 : index
    %11 = vector.load %arg1[%c0_10, %c0_11] : memref<8x16xf32, #tpu.memory_space<vmem>>, vector<8x16xf32>
    %cst = arith.constant dense<0.000000e+00> : vector<32x8xf32>
    %12 = tpu.matmul %0, %11, %cst {dimension_numbers = #tpu.dot_dimension_numbers<[1], [1], [0], [0], [0, 0, 1, 0], [], []>} : vector<32x16xf32>, vector<8x16xf32>, vector<32x8xf32> -> vector<32x8xf32>
    %13 = vector.broadcast %7 : vector<32x1xf32> to vector<32x8xf32>
    %14 = arith.addf %12, %13 : vector<32x8xf32>
    %cst_12 = arith.constant 0.000000e+00 : f32
    %15 = vector.broadcast %cst_12 : f32 to vector<32x8xf32>
    %16 = arith.maximumf %14, %15 : vector<32x8xf32>
    %cst_13 = arith.constant dense<0.000000e+00> : vector<32x8xf32>
    %17 = tpu.matmul %2, %16, %cst_13 {dimension_numbers = #tpu.dot_dimension_numbers<[1], [0], [0], [1], [0, 0, 1, 1], [], []>} : vector<32x32xf32>, vector<32x8xf32>, vector<32x8xf32> -> vector<32x8xf32>
    %18 = vector.broadcast %8 : vector<32x1xf32> to vector<32x8xf32>
    %19 = arith.addf %17, %18 : vector<32x8xf32>
    %cst_14 = arith.constant 0.000000e+00 : f32
    %20 = vector.broadcast %cst_14 : f32 to vector<32x8xf32>
    %21 = arith.maximumf %19, %20 : vector<32x8xf32>
    %cst_15 = arith.constant dense<0.000000e+00> : vector<32x8xf32>
    %22 = tpu.matmul %4, %21, %cst_15 {dimension_numbers = #tpu.dot_dimension_numbers<[1], [0], [0], [1], [0, 0, 1, 1], [], []>} : vector<32x32xf32>, vector<32x8xf32>, vector<32x8xf32> -> vector<32x8xf32>
    %23 = vector.broadcast %9 : vector<32x1xf32> to vector<32x8xf32>
    %24 = arith.addf %22, %23 : vector<32x8xf32>
    %cst_16 = arith.constant 0.000000e+00 : f32
    %25 = vector.broadcast %cst_16 : f32 to vector<32x8xf32>
    %26 = arith.maximumf %24, %25 : vector<32x8xf32>
    %27 = vector.broadcast %5 : vector<32x1xf32> to vector<32x8xf32>
    %28 = arith.mulf %26, %27 : vector<32x8xf32>
    %cst_17 = arith.constant dense<0.000000e+00> : vector<8xf32>
    %29 = vector.multi_reduction <add>, %28, %cst_17 [0] : vector<32x8xf32> to vector<8xf32>
    %30 = vector.shape_cast %29 : vector<8xf32> to vector<1x8xf32>
    %31 = vector.broadcast %10 : vector<1x1xf32> to vector<1x8xf32>
    %32 = arith.addf %30, %31 : vector<1x8xf32>
    %c0_18 = arith.constant 0 : index
    %c0_19 = arith.constant 0 : index
    %33 = vector.load %arg6[%c0_18, %c0_19] : memref<1x8xf32, #tpu.memory_space<vmem>>, vector<1x8xf32>
    tpu.vector_store %arg6[%c0_18, %c0_19], %32 {strides = array<i32>} : memref<1x8xf32, #tpu.memory_space<vmem>>, vector<1x8xf32>,
    return
  }
  func.func @transform_0(%arg0: i32) -> (i32, i32) {
    %c0_i32 = arith.constant 0 : i32
    %c0_i32_0 = arith.constant 0 : i32
    return %arg0, %c0_i32 : i32, i32
  }
  func.func @transform_1(%arg0: i32) -> (i32, i32) {
    %c0_i32 = arith.constant 0 : i32
    %c0_i32_0 = arith.constant 0 : i32
    %c0_i32_1 = arith.constant 0 : i32
    return %c0_i32, %c0_i32_0 : i32, i32
  }
  func.func @transform_2(%arg0: i32) -> (i32, i32, i32) {
    %c0_i32 = arith.constant 0 : i32
    %c0_i32_0 = arith.constant 0 : i32
    %c0_i32_1 = arith.constant 0 : i32
    %c0_i32_2 = arith.constant 0 : i32
    return %c0_i32, %c0_i32_0, %c0_i32_1 : i32, i32, i32
  }
  func.func @transform_3(%arg0: i32) -> (i32, i32) {
    %c0_i32 = arith.constant 0 : i32
    %c0_i32_0 = arith.constant 0 : i32
    %c0_i32_1 = arith.constant 0 : i32
    return %c0_i32, %c0_i32_0 : i32, i32
  }
  func.func @transform_4(%arg0: i32) -> (i32, i32) {
    %c0_i32 = arith.constant 0 : i32
    %c0_i32_0 = arith.constant 0 : i32
    %c0_i32_1 = arith.constant 0 : i32
    return %c0_i32, %c0_i32_0 : i32, i32
  }
  func.func @transform_5(%arg0: i32) -> (i32, i32) {
    %c0_i32 = arith.constant 0 : i32
    %c0_i32_0 = arith.constant 0 : i32
    return %c0_i32, %arg0 : i32, i32
  }
}

</mosaic_0001>

<llo_original>
// kernel: tpu_custom_call.1
$region0: #{tpu_custom_call.1}
  #allocation0 [shape = 'u32[]', space=smem, size = 0x4, offset = 0x4, fixed_abs, tag = 'smem constant byte address 0x4 - core index']
  #allocation1 [shape = 'u32[144,128]{1,0:T(1,128)}', space=vmem, size = 0x12000, scoped, tag = 'internal scratch']
  %s0 = inlined_call_operand.vmem [shape: f32[8,16], index: 0, kind: input, shape index: {}]
  %s1 = inlined_call_operand.vmem [shape: f32[32,16], index: 1, kind: input, shape index: {}]
  %s2 = inlined_call_operand.vmem [shape: f32[2,32,32], index: 2, kind: input, shape index: {}]
  %s3 = inlined_call_operand.vmem [shape: f32[32,1], index: 3, kind: input, shape index: {}]
  %s4 = inlined_call_operand.vmem [shape: f32[32,4], index: 4, kind: input, shape index: {}]
  %s5 = inlined_call_operand.hbm [shape: f32[1,8], index: 5, kind: output, shape index: {}]
  %s6 = sld [smem:[#allocation0]]
  $region30: #{tpu_custom_call.1} parent=0
    _
  %s8 = ssub.s32 1, %s6
  %s9 = scalar_select 0, %s8, %s6
  $region1: #{tpu_custom_call.1} parent=0
    #allocation2 [shape = 'u8[512]{0}', space=vmem, size = 0x400, scoped, tag = 'output window, operand 0, single buffered']
    #allocation3 [shape = 's32[1]{0}', space=sflag, size = 0x4, scoped, tag = 'scoped memory for tpu_custom_call.1']
    %10 = vsyncpa [#allocation3], 0
    // Predicated region
    $region2: #{tpu_custom_call.1} parent=1 // pred_check
      _
    $region3: #{tpu_custom_call.1} parent=1 // pred_check_branch
      %12 = sbr.rel (0) target = $region5
    $region4: #{tpu_custom_call.1} parent=1 // pred_region
      _
    $region5: #{tpu_custom_call.1} parent=1 // pred_fallthru
      _
    // Predicated region
    $region6: #{tpu_custom_call.1} parent=1 // pred_check
      _
    $region7: #{tpu_custom_call.1} parent=1 // pred_check_branch
      %14 = sbr.rel (0) target = $region9
    $region8: #{tpu_custom_call.1} parent=1 // pred_region
      _
    $region9: #{tpu_custom_call.1} parent=1 // pred_fallthru
      _
    // Predicated region
    $region10: #{tpu_custom_call.1} parent=1 // pred_check
      _
    $region11: #{tpu_custom_call.1} parent=1 // pred_check_branch
      %16 = sbr.rel (0) target = $region13
    $region12: #{tpu_custom_call.1} parent=1 // pred_region
      _
    $region13: #{tpu_custom_call.1} parent=1 // pred_fallthru
      _
    // Predicated region
    $region14: #{tpu_custom_call.1} parent=1 // pred_check
      _
    $region15: #{tpu_custom_call.1} parent=1 // pred_check_branch
      %18 = sbr.rel (0) target = $region17
    $region16: #{tpu_custom_call.1} parent=1 // pred_region
      _
    $region17: #{tpu_custom_call.1} parent=1 // pred_fallthru
      _
    // Predicated region
    $region18: #{tpu_custom_call.1} parent=1 // pred_check
      _
    $region19: #{tpu_custom_call.1} parent=1 // pred_check_branch
      %20 = sbr.rel (0) target = $region21
    $region20: #{tpu_custom_call.1} parent=1 // pred_region
      _
    $region21: #{tpu_custom_call.1} parent=1 // pred_fallthru
      _
    %v21 = vld [vmem:[%s1] sm:$0xff]
    %v22 = vld [vmem:[%s1 + $0x8] sm:$0xff]
    %v23 = vld [vmem:[%s1 + $0x10] sm:$0xff]
    %v24 = vld [vmem:[%s1 + $0x18] sm:$0xff]
    %v25 = vld [vmem:[%s2] sm:$0xff]
    %v26 = vld [vmem:[%s2 + $0x8] sm:$0xff]
    %v27 = vld [vmem:[%s2 + $0x10] sm:$0xff]
    %v28 = vld [vmem:[%s2 + $0x18] sm:$0xff]
    %s29 = scalar_lea.vmem %s2, 32
    %v30 = vld [vmem:[%s29] sm:$0xff]
    %v31 = vld [vmem:[%s29 + $0x8] sm:$0xff]
    %v32 = vld [vmem:[%s29 + $0x10] sm:$0xff]
    %v33 = vld [vmem:[%s29 + $0x18] sm:$0xff]
    %v34 = vld [vmem:[%s3] sm:$0xff]
    %v35 = vld [vmem:[%s3 + $0x8] sm:$0xff]
    %v36 = vld [vmem:[%s3 + $0x10] sm:$0xff]
    %v37 = vld [vmem:[%s3 + $0x18] sm:$0xff]
    %v38 = vld [vmem:[%s4] sm:$0xff]
    %v39 = vld [vmem:[%s4 + $0x8] sm:$0xff]
    %v40 = vld [vmem:[%s4 + $0x10] sm:$0xff]
    %v41 = vld [vmem:[%s4 + $0x18] sm:$0xff]
    %v42 = vld [vmem:[%s0] sm:$0xff]
    %44 = vset.pattern.permute.xlu0 0
    %45 = vperm.xlu0 %44, %v38
    %v46 = vpop.permute.xlu0 %45
    %49 = vset.pattern.permute.xlu0 0
    %50 = vperm.xlu0 %49, %v39
    %v51 = vpop.permute.xlu0 %50
    %54 = vset.pattern.permute.xlu0 0
    %55 = vperm.xlu0 %54, %v40
    %v56 = vpop.permute.xlu0 %55
    %59 = vset.pattern.permute.xlu0 0
    %60 = vperm.xlu0 %59, %v41
    %v61 = vpop.permute.xlu0 %60
    %vm63 = vcmask 130048
    %v65 = vsel %vm63, %v21, 0
    %v68 = vsel %vm63, %v22, 0
    %v71 = vsel %vm63, %v23, 0
    %v74 = vsel %vm63, %v24, 0
    %v77 = vsel %vm63, %v42, 0
    %79 = vmatprep.subr.mxu0 0.0
    %80 = vmatpush1.xpose.msra.mxu0 %v77
    %81 = vmatprep.subr.mxu0 0.0
    %82 = vmatpush1.xpose.msra.mxu0 0.0
    %83 = vmatprep.subr.mxu0 0.0
    %84 = vmatpush1.xpose.msra.mxu0 0.0
    %85 = vmatprep.subr.mxu0 0.0
    %86 = vmatpush1.xpose.msra.mxu0 0.0
    %87 = vmatprep.subr.mxu0 0.0
    %88 = vmatpush1.xpose.msra.mxu0 0.0
    %89 = vmatprep.subr.mxu0 0.0
    %90 = vmatpush1.xpose.msra.mxu0 0.0
    %91 = vmatprep.subr.mxu0 0.0
    %92 = vmatpush1.xpose.msra.mxu0 0.0
    %93 = vmatprep.subr.mxu0 0.0
    %94 = vmatpush1.xpose.msra.mxu0 0.0
    %95 = vmatprep.subr.mxu0 0.0
    %96 = vmatpush1.xpose.msra.mxu0 0.0
    %97 = vmatprep.subr.mxu0 0.0
    %98 = vmatpush1.xpose.msra.mxu0 0.0
    %99 = vmatprep.subr.mxu0 0.0
    %100 = vmatpush1.xpose.msra.mxu0 0.0
    %101 = vmatprep.subr.mxu0 0.0
    %102 = vmatpush1.xpose.msra.mxu0 0.0
    %103 = vmatprep.subr.mxu0 0.0
    %104 = vmatpush1.xpose.msra.mxu0 0.0
    %105 = vmatprep.subr.mxu0 0.0
    %106 = vmatpush1.xpose.msra.mxu0 0.0
    %107 = vmatprep.subr.mxu0 0.0
    %108 = vmatpush1.xpose.msra.mxu0 0.0
    %109 = vmatprep.subr.mxu0 0.0
    %110 = vmatpush1.xpose.msra.mxu0 0.0
    %111 = vmatprep.subr.mxu0 0.0
    %112 = vmatpush1.xpose.msra.mxu0 0.0
    %113 = vmatprep.subr.mxu0 0.0
    %114 = vmatpush1.xpose.msra.mxu0 0.0
    %115 = vmatprep.subr.mxu0 0.0
    %116 = vmatpush1.xpose.msra.mxu0 0.0
    %117 = vmatprep.subr.mxu0 0.0
    %118 = vmatpush1.xpose.msra.mxu0 0.0
    %119 = vmatprep.subr.mxu0 0.0
    %120 = vmatpush1.xpose.msra.mxu0 0.0
    %121 = vmatprep.subr.mxu0 0.0
    %122 = vmatpush1.xpose.msra.mxu0 0.0
    %123 = vmatprep.subr.mxu0 0.0
    %124 = vmatpush1.xpose.msra.mxu0 0.0
    %125 = vmatprep.subr.mxu0 0.0
    %126 = vmatpush1.xpose.msra.mxu0 0.0
    %127 = vmatprep.subr.mxu0 0.0
    %128 = vmatpush1.xpose.msra.mxu0 0.0
    %129 = vmatprep.subr.mxu0 0.0
    %130 = vmatpush1.xpose.msra.mxu0 0.0
    %131 = vmatprep.subr.mxu0 0.0
    %132 = vmatpush1.xpose.msra.mxu0 0.0
    %133 = vmatprep.subr.mxu0 0.0
    %134 = vmatpush1.xpose.msra.mxu0 0.0
    %135 = vmatprep.subr.mxu0 0.0
    %136 = vmatpush1.xpose.msra.mxu0 0.0
    %137 = vmatprep.subr.mxu0 0.0
    %138 = vmatpush1.xpose.msra.mxu0 0.0
    %139 = vmatprep.subr.mxu0 0.0
    %140 = vmatpush1.xpose.msra.mxu0 0.0
    %141 = vmatprep.subr.mxu0 0.0
    %142 = vmatpush1.xpose.msra.mxu0 0.0
    %143 = vmatprep.mubr.f32.mxu0 0.0
    %144 = vmatmul.mubr.f32.gmra.mrb[0].mxu0 %v65
    %v145 = vpop.f32.mrb[0].mxu0
    %v146 = vadd.f32 %v46, %v145
    %v147 = vpop.f32.mrb[0].mxu0
    %148 = vmatprep.mubr.f32.mxu0 0.0
    %149 = vmatmul.mubr.f32.gmra.mrb[0].mxu0 %v68
    %v150 = vpop.f32.mrb[0].mxu0
    %v151 = vadd.f32 %v51, %v150
    %v152 = vpop.f32.mrb[0].mxu0
    %153 = vmatprep.mubr.f32.mxu0 0.0
    %154 = vmatmul.mubr.f32.gmra.mrb[0].mxu0 %v71
    %v155 = vpop.f32.mrb[0].mxu0
    %v156 = vadd.f32 %v56, %v155
    %v157 = vpop.f32.mrb[0].mxu0
    %158 = vmatprep.mubr.f32.mxu0 0.0
    %159 = vmatmul.mubr.f32.gmra.mrb[0].mxu0 %v74
    %v160 = vpop.f32.mrb[0].mxu0
    %v161 = vadd.f32 %v61, %v160
    %v162 = vpop.f32.mrb[0].mxu0
    %163 = vdwg.mxu0
    %v164 = vmax.f32 %v146, 0.0
    %v165 = vmax.f32 %v151, 0.0
    %v166 = vmax.f32 %v156, 0.0
    %v167 = vmax.f32 %v161, 0.0
    %168 = vset.pattern.permute.xlu0 1
    %169 = vperm.xlu0 %168, %v38
    %v170 = vpop.permute.xlu0 %169
    %172 = vset.pattern.permute.xlu0 1
    %173 = vperm.xlu0 %172, %v39
    %v174 = vpop.permute.xlu0 %173
    %176 = vset.pattern.permute.xlu0 1
    %177 = vperm.xlu0 %176, %v40
    %v178 = vpop.permute.xlu0 %177
    %180 = vset.pattern.permute.xlu0 1
    %181 = vperm.xlu0 %180, %v41
    %v182 = vpop.permute.xlu0 %181
    %vm184 = vcmask 261120
    %v186 = vsel %vm184, %v25, 0
    %v189 = vsel %vm184, %v26, 0
    %v192 = vsel %vm184, %v27, 0
    %v195 = vsel %vm184, %v28, 0
    %197 = vmatprep.subr.mxu0 0.0
    %198 = vmatpush1.msra.mxu0 %v164
    %199 = vmatprep.subr.mxu0 0.0
    %200 = vmatpush1.msra.mxu0 %v165
    %201 = vmatprep.subr.mxu0 0.0
    %202 = vmatpush1.msra.mxu0 %v166
    %203 = vmatprep.subr.mxu0 0.0
    %204 = vmatpush1.msra.mxu0 %v167
    %205 = vmatprep.subr.mxu0 0.0
    %206 = vmatpush1.msra.mxu0 0.0
    %207 = vmatprep.subr.mxu0 0.0
    %208 = vmatpush1.msra.mxu0 0.0
    %209 = vmatprep.subr.mxu0 0.0
    %210 = vmatpush1.msra.mxu0 0.0
    %211 = vmatprep.subr.mxu0 0.0
    %212 = vmatpush1.msra.mxu0 0.0
    %213 = vmatprep.subr.mxu0 0.0
    %214 = vmatpush1.msra.mxu0 0.0
    %215 = vmatprep.subr.mxu0 0.0
    %216 = vmatpush1.msra.mxu0 0.0
    %217 = vmatprep.subr.mxu0 0.0
    %218 = vmatpush1.msra.mxu0 0.0
    %219 = vmatprep.subr.mxu0 0.0
    %220 = vmatpush1.msra.mxu0 0.0
    %221 = vmatprep.subr.mxu0 0.0
    %222 = vmatpush1.msra.mxu0 0.0
    %223 = vmatprep.subr.mxu0 0.0
    %224 = vmatpush1.msra.mxu0 0.0
    %225 = vmatprep.subr.mxu0 0.0
    %226 = vmatpush1.msra.mxu0 0.0
    %227 = vmatprep.subr.mxu0 0.0
    %228 = vmatpush1.msra.mxu0 0.0
    %229 = vmatprep.subr.mxu0 0.0
    %230 = vmatpush1.msra.mxu0 0.0
    %231 = vmatprep.subr.mxu0 0.0
    %232 = vmatpush1.msra.mxu0 0.0
    %233 = vmatprep.subr.mxu0 0.0
    %234 = vmatpush1.msra.mxu0 0.0
    %235 = vmatprep.subr.mxu0 0.0
    %236 = vmatpush1.msra.mxu0 0.0
    %237 = vmatprep.subr.mxu0 0.0
    %238 = vmatpush1.msra.mxu0 0.0
    %239 = vmatprep.subr.mxu0 0.0
    %240 = vmatpush1.msra.mxu0 0.0
    %241 = vmatprep.subr.mxu0 0.0
    %242 = vmatpush1.msra.mxu0 0.0
    %243 = vmatprep.subr.mxu0 0.0
    %244 = vmatpush1.msra.mxu0 0.0
    %245 = vmatprep.subr.mxu0 0.0
    %246 = vmatpush1.msra.mxu0 0.0
    %247 = vmatprep.subr.mxu0 0.0
    %248 = vmatpush1.msra.mxu0 0.0
    %249 = vmatprep.subr.mxu0 0.0
    %250 = vmatpush1.msra.mxu0 0.0
    %251 = vmatprep.subr.mxu0 0.0
    %252 = vmatpush1.msra.mxu0 0.0
    %253 = vmatprep.subr.mxu0 0.0
    %254 = vmatpush1.msra.mxu0 0.0
    %255 = vmatprep.subr.mxu0 0.0
    %256 = vmatpush1.msra.mxu0 0.0
    %257 = vmatprep.subr.mxu0 0.0
    %258 = vmatpush1.msra.mxu0 0.0
    %259 = vmatprep.subr.mxu0 0.0
    %260 = vmatpush1.msra.mxu0 0.0
    %261 = vmatprep.mubr.f32.mxu0 0.0
    %262 = vmatmul.mubr.f32.gmra.mrb[0].mxu0 %v186
    %v263 = vpop.f32.mrb[0].mxu0
    %v264 = vadd.f32 %v170, %v263
    %v265 = vpop.f32.mrb[0].mxu0
    %266 = vmatprep.mubr.f32.mxu0 0.0
    %267 = vmatmul.mubr.f32.gmra.mrb[0].mxu0 %v189
    %v268 = vpop.f32.mrb[0].mxu0
    %v269 = vadd.f32 %v174, %v268
    %v270 = vpop.f32.mrb[0].mxu0
    %271 = vmatprep.mubr.f32.mxu0 0.0
    %272 = vmatmul.mubr.f32.gmra.mrb[0].mxu0 %v192
    %v273 = vpop.f32.mrb[0].mxu0
    %v274 = vadd.f32 %v178, %v273
    %v275 = vpop.f32.mrb[0].mxu0
    %276 = vmatprep.mubr.f32.mxu0 0.0
    %277 = vmatmul.mubr.f32.gmra.mrb[0].mxu0 %v195
    %v278 = vpop.f32.mrb[0].mxu0
    %v279 = vadd.f32 %v182, %v278
    %v280 = vpop.f32.mrb[0].mxu0
    %281 = vdwg.mxu0
    %v282 = vmax.f32 %v264, 0.0
    %v283 = vmax.f32 %v269, 0.0
    %v284 = vmax.f32 %v274, 0.0
    %v285 = vmax.f32 %v279, 0.0
    %286 = vset.pattern.permute.xlu0 2
    %287 = vperm.xlu0 %286, %v38
    %v288 = vpop.permute.xlu0 %287
    %290 = vset.pattern.permute.xlu0 2
    %291 = vperm.xlu0 %290, %v39
    %v292 = vpop.permute.xlu0 %291
    %294 = vset.pattern.permute.xlu0 2
    %295 = vperm.xlu0 %294, %v40
    %v296 = vpop.permute.xlu0 %295
    %298 = vset.pattern.permute.xlu0 2
    %299 = vperm.xlu0 %298, %v41
    %v300 = vpop.permute.xlu0 %299
    %v303 = vsel %vm184, %v30, 0
    %v306 = vsel %vm184, %v31, 0
    %v309 = vsel %vm184, %v32, 0
    %v312 = vsel %vm184, %v33, 0
    %314 = vmatprep.subr.mxu0 0.0
    %315 = vmatpush1.msra.mxu0 %v282
    %316 = vmatprep.subr.mxu0 0.0
    %317 = vmatpush1.msra.mxu0 %v283
    %318 = vmatprep.subr.mxu0 0.0
    %319 = vmatpush1.msra.mxu0 %v284
    %320 = vmatprep.subr.mxu0 0.0
    %321 = vmatpush1.msra.mxu0 %v285
    %322 = vmatprep.subr.mxu0 0.0
    %323 = vmatpush1.msra.mxu0 0.0
    %324 = vmatprep.subr.mxu0 0.0
    %325 = vmatpush1.msra.mxu0 0.0
    %326 = vmatprep.subr.mxu0 0.0
    %327 = vmatpush1.msra.mxu0 0.0
    %328 = vmatprep.subr.mxu0 0.0
    %329 = vmatpush1.msra.mxu0 0.0
    %330 = vmatprep.subr.mxu0 0.0
    %331 = vmatpush1.msra.mxu0 0.0
    %332 = vmatprep.subr.mxu0 0.0
    %333 = vmatpush1.msra.mxu0 0.0
    %334 = vmatprep.subr.mxu0 0.0
    %335 = vmatpush1.msra.mxu0 0.0
    %336 = vmatprep.subr.mxu0 0.0
    %337 = vmatpush1.msra.mxu0 0.0
    %338 = vmatprep.subr.mxu0 0.0
    %339 = vmatpush1.msra.mxu0 0.0
    %340 = vmatprep.subr.mxu0 0.0
    %341 = vmatpush1.msra.mxu0 0.0
    %342 = vmatprep.subr.mxu0 0.0
    %343 = vmatpush1.msra.mxu0 0.0
    %344 = vmatprep.subr.mxu0 0.0
    %345 = vmatpush1.msra.mxu0 0.0
    %346 = vmatprep.subr.mxu0 0.0
    %347 = vmatpush1.msra.mxu0 0.0
    %348 = vmatprep.subr.mxu0 0.0
    %349 = vmatpush1.msra.mxu0 0.0
    %350 = vmatprep.subr.mxu0 0.0
    %351 = vmatpush1.msra.mxu0 0.0
    %352 = vmatprep.subr.mxu0 0.0
    %353 = vmatpush1.msra.mxu0 0.0
    %354 = vmatprep.subr.mxu0 0.0
    %355 = vmatpush1.msra.mxu0 0.0
    %356 = vmatprep.subr.mxu0 0.0
    %357 = vmatpush1.msra.mxu0 0.0
    %358 = vmatprep.subr.mxu0 0.0
    %359 = vmatpush1.msra.mxu0 0.0
    %360 = vmatprep.subr.mxu0 0.0
    %361 = vmatpush1.msra.mxu0 0.0
    %362 = vmatprep.subr.mxu0 0.0
    %363 = vmatpush1.msra.mxu0 0.0
    %364 = vmatprep.subr.mxu0 0.0
    %365 = vmatpush1.msra.mxu0 0.0
    %366 = vmatprep.subr.mxu0 0.0
    %367 = vmatpush1.msra.mxu0 0.0
    %368 = vmatprep.subr.mxu0 0.0
    %369 = vmatpush1.msra.mxu0 0.0
    %370 = vmatprep.subr.mxu0 0.0
    %371 = vmatpush1.msra.mxu0 0.0
    %372 = vmatprep.subr.mxu0 0.0
    %373 = vmatpush1.msra.mxu0 0.0
    %374 = vmatprep.subr.mxu0 0.0
    %375 = vmatpush1.msra.mxu0 0.0
    %376 = vmatprep.subr.mxu0 0.0
    %377 = vmatpush1.msra.mxu0 0.0
    %378 = vmatprep.mubr.f32.mxu0 0.0
    %379 = vmatmul.mubr.f32.gmra.mrb[0].mxu0 %v303
    %v380 = vpop.f32.mrb[0].mxu0
    %v381 = vadd.f32 %v288, %v380
    %v382 = vpop.f32.mrb[0].mxu0
    %383 = vmatprep.mubr.f32.mxu0 0.0
    %384 = vmatmul.mubr.f32.gmra.mrb[0].mxu0 %v306
    %v385 = vpop.f32.mrb[0].mxu0
    %v386 = vadd.f32 %v292, %v385
    %v387 = vpop.f32.mrb[0].mxu0
    %388 = vmatprep.mubr.f32.mxu0 0.0
    %389 = vmatmul.mubr.f32.gmra.mrb[0].mxu0 %v309
    %v390 = vpop.f32.mrb[0].mxu0
    %v391 = vadd.f32 %v296, %v390
    %v392 = vpop.f32.mrb[0].mxu0
    %393 = vmatprep.mubr.f32.mxu0 0.0
    %394 = vmatmul.mubr.f32.gmra.mrb[0].mxu0 %v312
    %v395 = vpop.f32.mrb[0].mxu0
    %v396 = vadd.f32 %v300, %v395
    %v397 = vpop.f32.mrb[0].mxu0
    %398 = vdwg.mxu0
    %v399 = vmax.f32 %v381, 0.0
    %v400 = vmax.f32 %v386, 0.0
    %v401 = vmax.f32 %v391, 0.0
    %v402 = vmax.f32 %v396, 0.0
    %404 = vset.pattern.permute.xlu0 0
    %405 = vperm.xlu0 %404, %v34
    %v406 = vpop.permute.xlu0 %405
    %409 = vset.pattern.permute.xlu0 0
    %410 = vperm.xlu0 %409, %v35
    %v411 = vpop.permute.xlu0 %410
    %414 = vset.pattern.permute.xlu0 0
    %415 = vperm.xlu0 %414, %v36
    %v416 = vpop.permute.xlu0 %415
    %419 = vset.pattern.permute.xlu0 0
    %420 = vperm.xlu0 %419, %v37
    %v421 = vpop.permute.xlu0 %420
    %v423 = vmul.f32 %v399, %v406
    %v424 = vmul.f32 %v400, %v411
    %v425 = vmul.f32 %v401, %v416
    %v426 = vmul.f32 %v402, %v421
    %vm427 = vcmask 64512
    %v428 = vsel %vm427, %v423, 0.0
    %v429 = vsel %vm427, %v424, 0.0
    %v430 = vadd.f32 %v428, %v429
    %v431 = vsel %vm427, %v425, 0.0
    %v432 = vadd.f32 %v430, %v431
    %v433 = vsel %vm427, %v426, 0.0
    %v434 = vadd.f32 %v432, %v433
    %v435 = vrot.slane %v434, 4
    %v436 = vadd.f32 %v434, %v435
    %v437 = vrot.slane %v436, 2
    %v438 = vadd.f32 %v436, %v437
    %v439 = vrot.slane %v438, 1
    %v440 = vadd.f32 %v438, %v439
    %441 = vset.pattern.permute.xlu0 3
    %442 = vperm.xlu0 %441, %v38
    %v443 = vpop.permute.xlu0 %442
    %v445 = vadd.f32 %v440, %v443
    %vm446 = vcmask 57344
    %447 = vst.msk [vmem:[#allocation2] sm:$0x1] %vm446, %v445
    // Predicated region
    $region22: #{tpu_custom_call.1} parent=1 // pred_check
      _
    $region23: #{tpu_custom_call.1} parent=1 // pred_check_branch
      %449 = sbr.rel (0) target = $region25
    $region24: #{tpu_custom_call.1} parent=1 // pred_region
      %s451 = ssub.s32 16, 16
      %452 = vsyncadd [#allocation3], %s451
      %s454 = sshll.u32 [#allocation2], 4
      %s455 = int_to_ptr.vmem [resolvable:$true] %s454
      %457 = dma.vmem_to_hbm [thread:$0]  %s455, 16, %s5, [#allocation3]
    $region25: #{tpu_custom_call.1} parent=1 // pred_fallthru
      _
    // Predicated region
    $region26: #{tpu_custom_call.1} parent=1 // pred_check
      _
    $region27: #{tpu_custom_call.1} parent=1 // pred_check_branch
      %459 = sbr.rel (0) target = $region29
    $region28: #{tpu_custom_call.1} parent=1 // pred_region
      %460 = dma.done [#allocation3], 16
    $region29: #{tpu_custom_call.1} parent=1 // pred_fallthru
      _
    %461 = vsyncpa [#allocation3], 1

</llo_original>
